<compile_context>
chip_gen: v7x
topology: tpu7x:2x2x1
jax: 0.10.0
libtpu: 0.0.40
codegen_flags: <defaults>
</compile_context>

<pallas_src>
import functools

import jax
import jax.numpy as jnp
from jax import lax
from jax.experimental import pallas as pl
from jax.experimental.pallas import tpu as pltpu


def _distill_kernel(lab_ref, x_ref, wt_ref, ws_ref, bt_ref, bs_ref, loss_ref,
                    acc_t_ref, acc_s_ref, *, temperature, alpha, batch):
    """alpha*CE(student, labels) + (1-alpha)*T^2*KL(teacher||student)."""
    k = pl.program_id(0)

    @pl.when(k == 0)
    def _init():
        acc_t_ref[...] = jnp.zeros_like(acc_t_ref)
        acc_s_ref[...] = jnp.zeros_like(acc_s_ref)

    # Teacher & student head matmuls on this D-tile.  Operands are streamed
    # from HBM as f32 (minimal bytes); the MXU is fed its native bf16 width
    # (the in-kernel VPU cast is hidden under the DMA), f32 accumulation.
    x_bf = x_ref[...].astype(jnp.bfloat16)
    acc_t_ref[...] += jnp.dot(x_bf, wt_ref[...].astype(jnp.bfloat16),
                              preferred_element_type=jnp.float32)
    acc_s_ref[...] += jnp.dot(x_bf, ws_ref[...].astype(jnp.bfloat16),
                              preferred_element_type=jnp.float32)

    @pl.when(k == pl.num_programs(0) - 1)
    def _finalize():
        t = float(temperature)
        inv_t = 1.0 / t
        inv_b = 1.0 / float(batch)

        t_logits = acc_t_ref[...] + bt_ref[...]          # [B, n_cls] f32
        s_logits = acc_s_ref[...] + bs_ref[...]          # [B, n_cls] f32

        # ---- distillation: KL(softmax(teacher/T) || softmax(student/T)) ----
        ts = t_logits * inv_t
        log_p_t = ts - jnp.max(ts, axis=-1, keepdims=True)
        log_p_t = log_p_t - jnp.log(
            jnp.sum(jnp.exp(log_p_t), axis=-1, keepdims=True))
        p_t = jnp.exp(log_p_t)                           # exact softmax

        ss = s_logits * inv_t
        log_q = ss - jnp.max(ss, axis=-1, keepdims=True)
        log_q = log_q - jnp.log(
            jnp.sum(jnp.exp(log_q), axis=-1, keepdims=True))

        # F.kl_div(log_q, p_t, reduction='batchmean') = sum(p*(logp-logq)) / B
        kl = jnp.sum(p_t * (log_p_t - log_q)) * inv_b
        distill_loss = kl * (t * t)

        # ---- student cross-entropy; one-hot from iota == SMEM label scalars -
        col = lax.broadcasted_iota(jnp.int32, s_logits.shape, 1)
        row = lax.broadcasted_iota(jnp.int32, s_logits.shape, 0)
        y1h = jnp.zeros(s_logits.shape, jnp.float32)
        for i in range(batch):                           # tiny static unroll
            y1h += jnp.where((row == i) & (col == lab_ref[i]), 1.0, 0.0)
        log_sm = s_logits - jnp.max(s_logits, axis=-1, keepdims=True)
        log_sm = log_sm - jnp.log(
            jnp.sum(jnp.exp(log_sm), axis=-1, keepdims=True))
        ce = -jnp.sum(y1h * log_sm) * inv_b

        loss = ce * float(alpha) + distill_loss * (1.0 - float(alpha))
        loss_ref[...] = jnp.broadcast_to(loss, loss_ref.shape)   # (1,1) store


def _vmem_capacity_bytes(default=64 * 1024 * 1024):
    """Per-generation VMEM capacity (conservative 64 MiB fallback = v7x)."""
    try:
        return int(getattr(pltpu.get_tpu_info(), "vmem_capacity_bytes", default))
    except Exception:
        return default


def simple_distiller_loss(img, labels, params, *, temperature=1.0, alpha=0.5,
                          tk=None):
    """Flattens img and runs the fused distillation-loss Pallas kernel."""
    b = img.shape[0]
    x = img.reshape(b, -1)                  # [B, D], NCHW row-major flatten
    d = x.shape[1]
    n_cls = params["ws"].shape[1]

    wt = params["wt"]                       # [D, n_cls] f32, unpadded
    ws = params["ws"]
    bt = params["bt"].reshape(1, n_cls)
    bs = params["bs"].reshape(1, n_cls)
    lab = labels.astype(jnp.int32)          # -> SMEM via scalar prefetch

    # Double-buffered per-step bytes for the f32 x / wt / ws streams.
    def step_bytes(t):
        return 2 * (b * t + 2 * t * n_cls) * 4

    vmem_cap = _vmem_capacity_bytes()
    budget = vmem_cap // 2                  # headroom for scratch / overheads

    if tk is None:
        if d % 128 == 0:
            cands = [c for c in (d, 32768, 16384, 8192, 4096, 2048, 1024, 512,
                                 256, 128) if c <= d and d % c == 0]
            tk = next((c for c in cands if step_bytes(c) <= budget), 128)
        else:
            # Remainder-free fallback: a full-D block (block == full array dim
            # keeps the BlockSpec legal for any D).
            tk = d
    assert d % tk == 0 and (tk == d or tk % 128 == 0), (d, tk)
    grid = (d // tk,)

    vmem_limit = int(min(0.8 * vmem_cap,
                         max(2 * step_bytes(tk) + (8 << 20), 16 << 20)))

    kernel = functools.partial(_distill_kernel, temperature=temperature,
                               alpha=alpha, batch=b)

    out = pl.pallas_call(
        kernel,
        out_shape=jax.ShapeDtypeStruct((1, 1), jnp.float32),
        grid_spec=pltpu.PrefetchScalarGridSpec(
            num_scalar_prefetch=1,                              # labels -> SMEM
            grid=grid,
            in_specs=[
                pl.BlockSpec((b, tk), lambda k, lbl: (0, k)),       # x tile
                pl.BlockSpec((tk, n_cls), lambda k, lbl: (k, 0)),   # teacher W
                pl.BlockSpec((tk, n_cls), lambda k, lbl: (k, 0)),   # student W
                pl.BlockSpec((1, n_cls), lambda k, lbl: (0, 0)),    # teacher b
                pl.BlockSpec((1, n_cls), lambda k, lbl: (0, 0)),    # student b
            ],
            out_specs=pl.BlockSpec((1, 1), lambda k, lbl: (0, 0)),
            scratch_shapes=[pltpu.VMEM((b, n_cls), jnp.float32),    # teacher acc
                            pltpu.VMEM((b, n_cls), jnp.float32)],   # student acc
        ),
        compiler_params=pltpu.CompilerParams(
            dimension_semantics=("arbitrary",),      # D is a reduction axis
            vmem_limit_bytes=vmem_limit,
        ),
    )(lab, x, wt, ws, bt, bs)
    return out[0, 0]


def _reference_loss(img, labels, params, *, temperature=1.0, alpha=0.5):
    """Pure-JAX reference mirroring the PyTorch module.

    The kernel feeds the MXU bf16 inputs (its native width) while streaming
    f32 from HBM; mirror that input rounding here with an exact f32
    contraction so the comparison isolates kernel correctness.
    """
    b = img.shape[0]
    x = img.reshape(b, -1).astype(jnp.bfloat16).astype(jnp.float32)
    wt = params["wt"].astype(jnp.bfloat16).astype(jnp.float32)
    ws = params["ws"].astype(jnp.bfloat16).astype(jnp.float32)
    hi = jax.lax.Precision.HIGHEST
    t_logits = jnp.dot(x, wt, precision=hi) + params["bt"].reshape(1, -1)
    s_logits = jnp.dot(x, ws, precision=hi) + params["bs"].reshape(1, -1)
    T = float(temperature)
    log_q = jax.nn.log_softmax(s_logits / T, axis=-1)
    p_t = jax.nn.softmax(t_logits / T, axis=-1)
    log_p_t = jax.nn.log_softmax(t_logits / T, axis=-1)
    kl = jnp.sum(p_t * (log_p_t - log_q)) / b
    distill = kl * T * T
    log_sm = jax.nn.log_softmax(s_logits, axis=-1)
    ce = -jnp.mean(jnp.take_along_axis(log_sm, labels[:, None], axis=-1))
    return ce * alpha + distill * (1.0 - alpha)


if __name__ == "__main__":
    # Small deterministic shapes: img [B=2, C=4, H=16, W=16] -> D=1024, 10 cls.
    key = jax.random.PRNGKey(0)
    k_img, k_lab, k_wt, k_bt, k_ws, k_bs = jax.random.split(key, 6)

    B, C, H, W = 2, 4, 16, 16
    D = C * H * W
    N_CLASSES = 10

    img = jax.random.normal(k_img, (B, C, H, W), dtype=jnp.float32)
    labels = jax.random.randint(k_lab, (B,), 0, N_CLASSES, dtype=jnp.int32)

    # Deterministic synthetic teacher/student linear-classifier weights.
    # NOTE: the torch module's teacher returns a tuple (teacher_logits[0]
    # used); here the teacher head directly produces that logits tensor.
    params = {
        "wt": 0.02 * jax.random.normal(k_wt, (D, N_CLASSES), dtype=jnp.float32),
        "bt": 0.01 * jax.random.normal(k_bt, (1, N_CLASSES), dtype=jnp.float32),
        "ws": 0.02 * jax.random.normal(k_ws, (D, N_CLASSES), dtype=jnp.float32),
        "bs": 0.01 * jax.random.normal(k_bs, (1, N_CLASSES), dtype=jnp.float32),
    }

    ref = _reference_loss(img, labels, params, temperature=2.0, alpha=0.5)

    # Default path: tk = D -> grid=(1,), the per-step-overhead-minimal layout.
    loss = simple_distiller_loss(img, labels, params, temperature=2.0, alpha=0.5)
    loss = jax.block_until_ready(loss)
    assert jnp.allclose(loss, ref, rtol=5e-4, atol=5e-5), (loss, ref)

    # Also exercise the D-tiled resident-accumulator path (grid > 1) once.
    loss_tiled = simple_distiller_loss(img, labels, params, temperature=2.0,
                                       alpha=0.5, tk=512)
    loss_tiled = jax.block_until_ready(loss_tiled)
    assert jnp.allclose(loss_tiled, ref, rtol=5e-4, atol=5e-5), (loss_tiled, ref)

    print("KERNEL_OK")
</pallas_src>

<mosaic_0001>
module attributes {stable_mosaic.version = 11 : i64} {
  func.func @_distill_kernel(%arg0: i32, %arg1: memref<2xi32, #tpu.memory_space<smem>>, %arg2: memref<2x1024xf32, #tpu.memory_space<vmem>>, %arg3: memref<1024x10xf32, #tpu.memory_space<vmem>>, %arg4: memref<1024x10xf32, #tpu.memory_space<vmem>>, %arg5: memref<1x10xf32, #tpu.memory_space<vmem>>, %arg6: memref<1x10xf32, #tpu.memory_space<vmem>>, %arg7: memref<1x1xf32, #tpu.memory_space<vmem>>, %arg8: memref<2x10xf32, #tpu.memory_space<vmem>>, %arg9: memref<2x10xf32, #tpu.memory_space<vmem>>) attributes {dimension_semantics = [#tpu.dimension_semantics<arbitrary>], iteration_bounds = array<i64: 1>, scalar_prefetch = 1 : i64, scratch_operands = 2 : i64, tpu.core_type = #tpu.core_type<tc>, window_params = [{transform_indices = @transform_0, window_bounds = array<i64: 2, 1024>}, {transform_indices = @transform_1, window_bounds = array<i64: 1024, 10>}, {transform_indices = @transform_2, window_bounds = array<i64: 1024, 10>}, {pipeline_mode = #tpu.pipeline_mode<synchronous>, transform_indices = @transform_3, window_bounds = array<i64: 1, 10>}, {pipeline_mode = #tpu.pipeline_mode<synchronous>, transform_indices = @transform_4, window_bounds = array<i64: 1, 10>}, {pipeline_mode = #tpu.pipeline_mode<synchronous>, transform_indices = @transform_5, window_bounds = array<i64: 1, 1>}]} {
    %c0_i32 = arith.constant 0 : i32
    %0 = arith.cmpi eq, %arg0, %c0_i32 : i32
    %1 = arith.extui %0 : i1 to i32
    %c0_i32_0 = arith.constant 0 : i32
    %2 = arith.cmpi ne, %1, %c0_i32_0 : i32
    scf.if %2 {
      %cst_17 = arith.constant 0.000000e+00 : f32
      %20 = vector.broadcast %cst_17 : f32 to vector<2x10xf32>
      %c0_18 = arith.constant 0 : index
      %c0_19 = arith.constant 0 : index
      %21 = vector.load %arg8[%c0_18, %c0_19] : memref<2x10xf32, #tpu.memory_space<vmem>>, vector<2x10xf32>
      tpu.vector_store %arg8[%c0_18, %c0_19], %20 {strides = array<i32>} : memref<2x10xf32, #tpu.memory_space<vmem>>, vector<2x10xf32>,
      %cst_20 = arith.constant 0.000000e+00 : f32
      %22 = vector.broadcast %cst_20 : f32 to vector<2x10xf32>
      %c0_21 = arith.constant 0 : index
      %c0_22 = arith.constant 0 : index
      %23 = vector.load %arg9[%c0_21, %c0_22] : memref<2x10xf32, #tpu.memory_space<vmem>>, vector<2x10xf32>
      tpu.vector_store %arg9[%c0_21, %c0_22], %22 {strides = array<i32>} : memref<2x10xf32, #tpu.memory_space<vmem>>, vector<2x10xf32>,
    } else {
    }
    %c0 = arith.constant 0 : index
    %c0_1 = arith.constant 0 : index
    %3 = vector.load %arg2[%c0, %c0_1] : memref<2x1024xf32, #tpu.memory_space<vmem>>, vector<2x1024xf32>
    %4 = arith.truncf %3 : vector<2x1024xf32> to vector<2x1024xbf16>
    %c0_2 = arith.constant 0 : index
    %c0_3 = arith.constant 0 : index
    %5 = vector.load %arg8[%c0_2, %c0_3] : memref<2x10xf32, #tpu.memory_space<vmem>>, vector<2x10xf32>
    %c0_4 = arith.constant 0 : index
    %c0_5 = arith.constant 0 : index
    %6 = vector.load %arg3[%c0_4, %c0_5] : memref<1024x10xf32, #tpu.memory_space<vmem>>, vector<1024x10xf32>
    %7 = arith.truncf %6 : vector<1024x10xf32> to vector<1024x10xbf16>
    %cst = arith.constant dense<0.000000e+00> : vector<2x10xf32>
    %8 = tpu.matmul %4, %7, %cst {dimension_numbers = #tpu.dot_dimension_numbers<[1], [0], [0], [1], [0, 0, 1, 1], [], []>} : vector<2x1024xbf16>, vector<1024x10xbf16>, vector<2x10xf32> -> vector<2x10xf32>
    %9 = arith.addf %5, %8 : vector<2x10xf32>
    %c0_6 = arith.constant 0 : index
    %c0_7 = arith.constant 0 : index
    %10 = vector.load %arg8[%c0_6, %c0_7] : memref<2x10xf32, #tpu.memory_space<vmem>>, vector<2x10xf32>
    tpu.vector_store %arg8[%c0_6, %c0_7], %9 {strides = array<i32>} : memref<2x10xf32, #tpu.memory_space<vmem>>, vector<2x10xf32>,
    %c0_8 = arith.constant 0 : index
    %c0_9 = arith.constant 0 : index
    %11 = vector.load %arg9[%c0_8, %c0_9] : memref<2x10xf32, #tpu.memory_space<vmem>>, vector<2x10xf32>
    %c0_10 = arith.constant 0 : index
    %c0_11 = arith.constant 0 : index
    %12 = vector.load %arg4[%c0_10, %c0_11] : memref<1024x10xf32, #tpu.memory_space<vmem>>, vector<1024x10xf32>
    %13 = arith.truncf %12 : vector<1024x10xf32> to vector<1024x10xbf16>
    %cst_12 = arith.constant dense<0.000000e+00> : vector<2x10xf32>
    %14 = tpu.matmul %4, %13, %cst_12 {dimension_numbers = #tpu.dot_dimension_numbers<[1], [0], [0], [1], [0, 0, 1, 1], [], []>} : vector<2x1024xbf16>, vector<1024x10xbf16>, vector<2x10xf32> -> vector<2x10xf32>
    %15 = arith.addf %11, %14 : vector<2x10xf32>
    %c0_13 = arith.constant 0 : index
    %c0_14 = arith.constant 0 : index
    %16 = vector.load %arg9[%c0_13, %c0_14] : memref<2x10xf32, #tpu.memory_space<vmem>>, vector<2x10xf32>
    tpu.vector_store %arg9[%c0_13, %c0_14], %15 {strides = array<i32>} : memref<2x10xf32, #tpu.memory_space<vmem>>, vector<2x10xf32>,
    %c0_i32_15 = arith.constant 0 : i32
    %17 = arith.cmpi eq, %arg0, %c0_i32_15 : i32
    %18 = arith.extui %17 : i1 to i32
    %c0_i32_16 = arith.constant 0 : i32
    %19 = arith.cmpi ne, %18, %c0_i32_16 : i32
    scf.if %19 {
      %c0_17 = arith.constant 0 : index
      %c0_18 = arith.constant 0 : index
      %20 = vector.load %arg8[%c0_17, %c0_18] : memref<2x10xf32, #tpu.memory_space<vmem>>, vector<2x10xf32>
      %c0_19 = arith.constant 0 : index
      %c0_20 = arith.constant 0 : index
      %21 = vector.load %arg5[%c0_19, %c0_20] : memref<1x10xf32, #tpu.memory_space<vmem>>, vector<1x10xf32>
      %22 = vector.broadcast %21 : vector<1x10xf32> to vector<2x10xf32>
      %23 = arith.addf %20, %22 : vector<2x10xf32>
      %c0_21 = arith.constant 0 : index
      %c0_22 = arith.constant 0 : index
      %24 = vector.load %arg9[%c0_21, %c0_22] : memref<2x10xf32, #tpu.memory_space<vmem>>, vector<2x10xf32>
      %c0_23 = arith.constant 0 : index
      %c0_24 = arith.constant 0 : index
      %25 = vector.load %arg6[%c0_23, %c0_24] : memref<1x10xf32, #tpu.memory_space<vmem>>, vector<1x10xf32>
      %26 = vector.broadcast %25 : vector<1x10xf32> to vector<2x10xf32>
      %27 = arith.addf %24, %26 : vector<2x10xf32>
      %cst_25 = arith.constant 5.000000e-01 : f32
      %28 = vector.broadcast %cst_25 : f32 to vector<2x10xf32>
      %29 = arith.mulf %23, %28 : vector<2x10xf32>
      %cst_26 = arith.constant dense<0xFF800000> : vector<2xf32>
      %30 = vector.multi_reduction <maximumf>, %29, %cst_26 [1] : vector<2x10xf32> to vector<2xf32>
      %31 = vector.shape_cast %30 : vector<2xf32> to vector<2x1xf32>
      %32 = vector.broadcast %31 : vector<2x1xf32> to vector<2x10xf32>
      %33 = arith.subf %29, %32 : vector<2x10xf32>
      %34 = math.exp %33 : vector<2x10xf32>
      %cst_27 = arith.constant dense<0.000000e+00> : vector<2xf32>
      %35 = vector.multi_reduction <add>, %34, %cst_27 [1] : vector<2x10xf32> to vector<2xf32>
      %36 = vector.shape_cast %35 : vector<2xf32> to vector<2x1xf32>
      %37 = math.log %36 : vector<2x1xf32>
      %38 = vector.broadcast %37 : vector<2x1xf32> to vector<2x10xf32>
      %39 = arith.subf %33, %38 : vector<2x10xf32>
      %40 = math.exp %39 : vector<2x10xf32>
      %cst_28 = arith.constant 5.000000e-01 : f32
      %41 = vector.broadcast %cst_28 : f32 to vector<2x10xf32>
      %42 = arith.mulf %27, %41 : vector<2x10xf32>
      %cst_29 = arith.constant dense<0xFF800000> : vector<2xf32>
      %43 = vector.multi_reduction <maximumf>, %42, %cst_29 [1] : vector<2x10xf32> to vector<2xf32>
      %44 = vector.shape_cast %43 : vector<2xf32> to vector<2x1xf32>
      %45 = vector.broadcast %44 : vector<2x1xf32> to vector<2x10xf32>
      %46 = arith.subf %42, %45 : vector<2x10xf32>
      %47 = math.exp %46 : vector<2x10xf32>
      %cst_30 = arith.constant dense<0.000000e+00> : vector<2xf32>
      %48 = vector.multi_reduction <add>, %47, %cst_30 [1] : vector<2x10xf32> to vector<2xf32>
      %49 = vector.shape_cast %48 : vector<2xf32> to vector<2x1xf32>
      %50 = math.log %49 : vector<2x1xf32>
      %51 = vector.broadcast %50 : vector<2x1xf32> to vector<2x10xf32>
      %52 = arith.subf %46, %51 : vector<2x10xf32>
      %53 = arith.subf %39, %52 : vector<2x10xf32>
      %54 = arith.mulf %40, %53 : vector<2x10xf32>
      %55 = vector.shape_cast %54 : vector<2x10xf32> to vector<1x2x10xf32>
      %cst_31 = arith.constant dense<0.000000e+00> : vector<1xf32>
      %56 = vector.multi_reduction <add>, %55, %cst_31 [1, 2] : vector<1x2x10xf32> to vector<1xf32>
      %57 = vector.shape_cast %56 : vector<1xf32> to vector<1x1x1xf32>
      %58 = vector.extract %57[0, 0, 0] : f32 from vector<1x1x1xf32>
      %cst_32 = arith.constant 5.000000e-01 : f32
      %59 = arith.mulf %58, %cst_32 : f32
      %cst_33 = arith.constant 4.000000e+00 : f32
      %60 = arith.mulf %59, %cst_33 : f32
      %61 = tpu.iota {dimensions = array<i32: 1>} : vector<2x10xi32>
      %62 = tpu.iota {dimensions = array<i32: 0>} : vector<2x10xi32>
      %cst_34 = arith.constant 0.000000e+00 : f32
      %63 = vector.broadcast %cst_34 : f32 to vector<2x10xf32>
      %c0_i32_35 = arith.constant 0 : i32
      %64 = vector.broadcast %c0_i32_35 : i32 to vector<2x10xi32>
      %65 = arith.cmpi eq, %62, %64 : vector<2x10xi32>
      %c0_36 = arith.constant 0 : index
      %66 = memref.load %arg1[%c0_36] : memref<2xi32, #tpu.memory_space<smem>>
      %67 = vector.broadcast %66 : i32 to vector<2x10xi32>
      %68 = arith.cmpi eq, %61, %67 : vector<2x10xi32>
      %69 = arith.andi %65, %68 : vector<2x10xi1>
      %cst_37 = arith.constant 1.000000e+00 : f32
      %cst_38 = arith.constant 0.000000e+00 : f32
      %70 = vector.broadcast %cst_37 : f32 to vector<2x10xf32>
      %71 = vector.broadcast %cst_38 : f32 to vector<2x10xf32>
      %72 = arith.select %69, %70, %71 : vector<2x10xi1>, vector<2x10xf32>
      %73 = arith.addf %63, %72 : vector<2x10xf32>
      %c1_i32 = arith.constant 1 : i32
      %74 = vector.broadcast %c1_i32 : i32 to vector<2x10xi32>
      %75 = arith.cmpi eq, %62, %74 : vector<2x10xi32>
      %c1 = arith.constant 1 : index
      %76 = memref.load %arg1[%c1] : memref<2xi32, #tpu.memory_space<smem>>
      %77 = vector.broadcast %76 : i32 to vector<2x10xi32>
      %78 = arith.cmpi eq, %61, %77 : vector<2x10xi32>
      %79 = arith.andi %75, %78 : vector<2x10xi1>
      %cst_39 = arith.constant 1.000000e+00 : f32
      %cst_40 = arith.constant 0.000000e+00 : f32
      %80 = vector.broadcast %cst_39 : f32 to vector<2x10xf32>
      %81 = vector.broadcast %cst_40 : f32 to vector<2x10xf32>
      %82 = arith.select %79, %80, %81 : vector<2x10xi1>, vector<2x10xf32>
      %83 = arith.addf %73, %82 : vector<2x10xf32>
      %cst_41 = arith.constant dense<0xFF800000> : vector<2xf32>
      %84 = vector.multi_reduction <maximumf>, %27, %cst_41 [1] : vector<2x10xf32> to vector<2xf32>
      %85 = vector.shape_cast %84 : vector<2xf32> to vector<2x1xf32>
      %86 = vector.broadcast %85 : vector<2x1xf32> to vector<2x10xf32>
      %87 = arith.subf %27, %86 : vector<2x10xf32>
      %88 = math.exp %87 : vector<2x10xf32>
      %cst_42 = arith.constant dense<0.000000e+00> : vector<2xf32>
      %89 = vector.multi_reduction <add>, %88, %cst_42 [1] : vector<2x10xf32> to vector<2xf32>
      %90 = vector.shape_cast %89 : vector<2xf32> to vector<2x1xf32>
      %91 = math.log %90 : vector<2x1xf32>
      %92 = vector.broadcast %91 : vector<2x1xf32> to vector<2x10xf32>
      %93 = arith.subf %87, %92 : vector<2x10xf32>
      %94 = arith.mulf %83, %93 : vector<2x10xf32>
      %95 = vector.shape_cast %94 : vector<2x10xf32> to vector<1x2x10xf32>
      %cst_43 = arith.constant dense<0.000000e+00> : vector<1xf32>
      %96 = vector.multi_reduction <add>, %95, %cst_43 [1, 2] : vector<1x2x10xf32> to vector<1xf32>
      %97 = vector.shape_cast %96 : vector<1xf32> to vector<1x1x1xf32>
      %98 = vector.extract %97[0, 0, 0] : f32 from vector<1x1x1xf32>
      %cst_44 = arith.constant 0.000000e+00 : f32
      %99 = arith.subf %cst_44, %98 : f32
      %cst_45 = arith.constant 5.000000e-01 : f32
      %100 = arith.mulf %99, %cst_45 : f32
      %cst_46 = arith.constant 5.000000e-01 : f32
      %101 = arith.mulf %100, %cst_46 : f32
      %cst_47 = arith.constant 5.000000e-01 : f32
      %102 = arith.mulf %60, %cst_47 : f32
      %103 = arith.addf %101, %102 : f32
      %104 = vector.broadcast %103 : f32 to vector<1x1xf32>
      %c0_48 = arith.constant 0 : index
      %c0_49 = arith.constant 0 : index
      %105 = vector.load %arg7[%c0_48, %c0_49] : memref<1x1xf32, #tpu.memory_space<vmem>>, vector<1x1xf32>
      tpu.vector_store %arg7[%c0_48, %c0_49], %104 {strides = array<i32>} : memref<1x1xf32, #tpu.memory_space<vmem>>, vector<1x1xf32>,
    } else {
    }
    return
  }
  func.func @transform_0(%arg0: i32, %arg1: memref<2xi32, #tpu.memory_space<smem>>) -> (i32, i32) {
    %c0_i32 = arith.constant 0 : i32
    %c0_i32_0 = arith.constant 0 : i32
    return %c0_i32, %arg0 : i32, i32
  }
  func.func @transform_1(%arg0: i32, %arg1: memref<2xi32, #tpu.memory_space<smem>>) -> (i32, i32) {
    %c0_i32 = arith.constant 0 : i32
    %c0_i32_0 = arith.constant 0 : i32
    return %arg0, %c0_i32 : i32, i32
  }
  func.func @transform_2(%arg0: i32, %arg1: memref<2xi32, #tpu.memory_space<smem>>) -> (i32, i32) {
    %c0_i32 = arith.constant 0 : i32
    %c0_i32_0 = arith.constant 0 : i32
    return %arg0, %c0_i32 : i32, i32
  }
  func.func @transform_3(%arg0: i32, %arg1: memref<2xi32, #tpu.memory_space<smem>>) -> (i32, i32) {
    %c0_i32 = arith.constant 0 : i32
    %c0_i32_0 = arith.constant 0 : i32
    %c0_i32_1 = arith.constant 0 : i32
    return %c0_i32, %c0_i32_0 : i32, i32
  }
  func.func @transform_4(%arg0: i32, %arg1: memref<2xi32, #tpu.memory_space<smem>>) -> (i32, i32) {
    %c0_i32 = arith.constant 0 : i32
    %c0_i32_0 = arith.constant 0 : i32
    %c0_i32_1 = arith.constant 0 : i32
    return %c0_i32, %c0_i32_0 : i32, i32
  }
  func.func @transform_5(%arg0: i32, %arg1: memref<2xi32, #tpu.memory_space<smem>>) -> (i32, i32) {
    %c0_i32 = arith.constant 0 : i32
    %c0_i32_0 = arith.constant 0 : i32
    %c0_i32_1 = arith.constant 0 : i32
    return %c0_i32, %c0_i32_0 : i32, i32
  }
}

</mosaic_0001>

<llo_original>
// kernel: tpu_custom_call.1
$region0: #{tpu_custom_call.1}
  #allocation0 [shape = 'u32[]', space=smem, size = 0x4, offset = 0x4, fixed_abs, tag = 'smem constant byte address 0x4 - core index']
  #allocation1 [shape = 'u32[144,128]{1,0:T(1,128)}', space=vmem, size = 0x12000, scoped, tag = 'internal scratch']
  #allocation2 [shape = 'f32[2,10]{1,0:T(2,128)}', space=vmem, size = 0x400, scoped, tag = 'scratch operand']
  #allocation3 [shape = 'f32[2,10]{1,0:T(2,128)}', space=vmem, size = 0x400, scoped, tag = 'scratch operand']
  #allocation4 [shape = 's32[1]{0}', space=sflag, size = 0x4, scoped, tag = 'scoped memory for tpu_custom_call.1']
  #allocation5 [shape = 'u8[512]{0}', space=smem, size = 0x200, scoped, tag = 'prefetched SMEM operand 0']
  %s0 = inlined_call_operand.vmem [shape: s32[2], index: 0, kind: input, shape index: {}]
  %s1 = inlined_call_operand.vmem [shape: f32[2,1024], index: 1, kind: input, shape index: {}]
  %s2 = inlined_call_operand.vmem [shape: f32[1024,10], index: 2, kind: input, shape index: {}]
  %s3 = inlined_call_operand.vmem [shape: f32[1024,10], index: 3, kind: input, shape index: {}]
  %s4 = inlined_call_operand.vmem [shape: f32[1,10], index: 4, kind: input, shape index: {}]
  %s5 = inlined_call_operand.vmem [shape: f32[1,10], index: 5, kind: input, shape index: {}]
  %s6 = inlined_call_operand.hbm [shape: f32[1,1], index: 6, kind: output, shape index: {}]
  %s7 = sld [smem:[#allocation0]]
  $region38: #{tpu_custom_call.1} parent=0
    _
  %s9 = ssub.s32 1, %s7
  %s10 = scalar_select 0, %s9, %s7
  %s11 = sshll.u32 %s0, 4
  %s12 = int_to_ptr.vmem [resolvable:$true] %s11
  %14 = dma.vmem_to_smem %s12, 16, [#allocation5], [#allocation4]
  %15 = dma.done [#allocation4], 16
  %16 = sfence
  $region1: #{tpu_custom_call.1} parent=0
    #allocation6 [shape = 'u8[512]{0}', space=vmem, size = 0x400, scoped, tag = 'output window, operand 0, single buffered']
    #allocation7 [shape = 's32[1]{0}', space=sflag, size = 0x4, scoped, tag = 'scoped memory for tpu_custom_call.1']
    %17 = vsyncpa [#allocation7], 0
    // Predicated region
    $region2: #{tpu_custom_call.1} parent=1 // pred_check
      _
    $region3: #{tpu_custom_call.1} parent=1 // pred_check_branch
      %19 = sbr.rel (0) target = $region5
    $region4: #{tpu_custom_call.1} parent=1 // pred_region
      _
    $region5: #{tpu_custom_call.1} parent=1 // pred_fallthru
      _
    // Predicated region
    $region6: #{tpu_custom_call.1} parent=1 // pred_check
      _
    $region7: #{tpu_custom_call.1} parent=1 // pred_check_branch
      %21 = sbr.rel (0) target = $region9
    $region8: #{tpu_custom_call.1} parent=1 // pred_region
      _
    $region9: #{tpu_custom_call.1} parent=1 // pred_fallthru
      _
    // Predicated region
    $region10: #{tpu_custom_call.1} parent=1 // pred_check
      _
    $region11: #{tpu_custom_call.1} parent=1 // pred_check_branch
      %23 = sbr.rel (0) target = $region13
    $region12: #{tpu_custom_call.1} parent=1 // pred_region
      _
    $region13: #{tpu_custom_call.1} parent=1 // pred_fallthru
      _
    // Predicated region
    $region14: #{tpu_custom_call.1} parent=1 // pred_check
      _
    $region15: #{tpu_custom_call.1} parent=1 // pred_check_branch
      %25 = sbr.rel (0) target = $region17
    $region16: #{tpu_custom_call.1} parent=1 // pred_region
      _
    $region17: #{tpu_custom_call.1} parent=1 // pred_fallthru
      _
    // Predicated region
    $region18: #{tpu_custom_call.1} parent=1 // pred_check
      _
    $region19: #{tpu_custom_call.1} parent=1 // pred_check_branch
      %27 = sbr.rel (0) target = $region21
    $region20: #{tpu_custom_call.1} parent=1 // pred_region
      _
    $region21: #{tpu_custom_call.1} parent=1 // pred_fallthru
      _
    %p29 = scmp.eq.s32.totalorder 0, 0
    // Predicated region
    $region22: #{tpu_custom_call.1} parent=1 // pred_check
      %p30 = pneg %p29
    $region23: #{tpu_custom_call.1} parent=1 // pred_check_branch
      %32 = sbr.rel (%p30) target = $region25
    $region24: #{tpu_custom_call.1} parent=1 // pred_region
      %vm33 = vcmask 74752
      %34 = vst.msk [vmem:[#allocation2] sm:$0x3] %vm33, 0.0
      %35 = vst.msk [vmem:[#allocation3] sm:$0x3] %vm33, 0.0
    $region25: #{tpu_custom_call.1} parent=1 // pred_fallthru
      _
    %v36 = vld [vmem:[%s1] sm:$0xff]
    %v37 = vld [vmem:[%s1 + $0x8] sm:$0xff]
    %v40 = vcombine.high %v36, %v36
    %v42 = vunpack.c.l.s4 1983009808
    %v43 = vunpack.c.0.s8 %v42
    %v44 = vlaneseq
    %v45 = vshrl.u32 %v44, 7
    %v46 = vsub.s32 %v43, %v45
    %v47 = vrot.slane %v36, %v46
    %v49 = vunpack.c.l.s4 1983009808
    %v50 = vunpack.c.0.s8 %v49
    %v51 = vlaneseq
    %v52 = vshrl.u32 %v51, 7
    %v53 = vsub.s32 %v50, %v52
    %v54 = vrot.slane %v40, %v53
    %v55 = vcombine.high %v47, %v47
    %v56 = vcombine.high %v54, %v54
    %v57 = vcombine.high %v37, %v37
    %v59 = vunpack.c.l.s4 1983009808
    %v60 = vunpack.c.0.s8 %v59
    %v61 = vlaneseq
    %v62 = vshrl.u32 %v61, 7
    %v63 = vsub.s32 %v60, %v62
    %v64 = vrot.slane %v37, %v63
    %v66 = vunpack.c.l.s4 1983009808
    %v67 = vunpack.c.0.s8 %v66
    %v68 = vlaneseq
    %v69 = vshrl.u32 %v68, 7
    %v70 = vsub.s32 %v67, %v69
    %v71 = vrot.slane %v57, %v70
    %v72 = vcombine.high %v64, %v64
    %v73 = vcombine.high %v71, %v71
    %v82 = vpack.c.bf16 %v47, %v47
    %v83 = vpack.c.bf16 %v55, %v55
    %v84 = vpack.c.bf16 %v54, %v54
    %v85 = vpack.c.bf16 %v56, %v56
    %v86 = vpack.c.bf16 %v64, %v64
    %v87 = vpack.c.bf16 %v72, %v72
    %v88 = vpack.c.bf16 %v71, %v71
    %v89 = vpack.c.bf16 %v73, %v73
    %v90 = vld [vmem:[#allocation2] sm:$0x3]
    %v91 = vld [vmem:[%s2] sm:$0xff]
    %v92 = vld [vmem:[%s2 + $0x8] sm:$0xff]
    %v93 = vld [vmem:[%s2 + $0x10] sm:$0xff]
    %v94 = vld [vmem:[%s2 + $0x18] sm:$0xff]
    %v95 = vld [vmem:[%s2 + $0x20] sm:$0xff]
    %v96 = vld [vmem:[%s2 + $0x28] sm:$0xff]
    %v97 = vld [vmem:[%s2 + $0x30] sm:$0xff]
    %v98 = vld [vmem:[%s2 + $0x38] sm:$0xff]
    %v99 = vld [vmem:[%s2 + $0x40] sm:$0xff]
    %v100 = vld [vmem:[%s2 + $0x48] sm:$0xff]
    %v101 = vld [vmem:[%s2 + $0x50] sm:$0xff]
    %v102 = vld [vmem:[%s2 + $0x58] sm:$0xff]
    %v103 = vld [vmem:[%s2 + $0x60] sm:$0xff]
    %v104 = vld [vmem:[%s2 + $0x68] sm:$0xff]
    %v105 = vld [vmem:[%s2 + $0x70] sm:$0xff]
    %v106 = vld [vmem:[%s2 + $0x78] sm:$0xff]
    %v107 = vld [vmem:[%s2 + $0x80] sm:$0xff]
    %v108 = vld [vmem:[%s2 + $0x88] sm:$0xff]
    %v109 = vld [vmem:[%s2 + $0x90] sm:$0xff]
    %v110 = vld [vmem:[%s2 + $0x98] sm:$0xff]
    %v111 = vld [vmem:[%s2 + $0xa0] sm:$0xff]
    %v112 = vld [vmem:[%s2 + $0xa8] sm:$0xff]
    %v113 = vld [vmem:[%s2 + $0xb0] sm:$0xff]
    %v114 = vld [vmem:[%s2 + $0xb8] sm:$0xff]
    %v115 = vld [vmem:[%s2 + $0xc0] sm:$0xff]
    %v116 = vld [vmem:[%s2 + $0xc8] sm:$0xff]
    %v117 = vld [vmem:[%s2 + $0xd0] sm:$0xff]
    %v118 = vld [vmem:[%s2 + $0xd8] sm:$0xff]
    %v119 = vld [vmem:[%s2 + $0xe0] sm:$0xff]
    %v120 = vld [vmem:[%s2 + $0xe8] sm:$0xff]
    %v121 = vld [vmem:[%s2 + $0xf0] sm:$0xff]
    %v122 = vld [vmem:[%s2 + $0xf8] sm:$0xff]
    %v123 = vld [vmem:[%s2 + $0x100] sm:$0xff]
    %v124 = vld [vmem:[%s2 + $0x108] sm:$0xff]
    %v125 = vld [vmem:[%s2 + $0x110] sm:$0xff]
    %v126 = vld [vmem:[%s2 + $0x118] sm:$0xff]
    %v127 = vld [vmem:[%s2 + $0x120] sm:$0xff]
    %v128 = vld [vmem:[%s2 + $0x128] sm:$0xff]
    %v129 = vld [vmem:[%s2 + $0x130] sm:$0xff]
    %v130 = vld [vmem:[%s2 + $0x138] sm:$0xff]
    %v131 = vld [vmem:[%s2 + $0x140] sm:$0xff]
    %v132 = vld [vmem:[%s2 + $0x148] sm:$0xff]
    %v133 = vld [vmem:[%s2 + $0x150] sm:$0xff]
    %v134 = vld [vmem:[%s2 + $0x158] sm:$0xff]
    %v135 = vld [vmem:[%s2 + $0x160] sm:$0xff]
    %v136 = vld [vmem:[%s2 + $0x168] sm:$0xff]
    %v137 = vld [vmem:[%s2 + $0x170] sm:$0xff]
    %v138 = vld [vmem:[%s2 + $0x178] sm:$0xff]
    %v139 = vld [vmem:[%s2 + $0x180] sm:$0xff]
    %v140 = vld [vmem:[%s2 + $0x188] sm:$0xff]
    %v141 = vld [vmem:[%s2 + $0x190] sm:$0xff]
    %v142 = vld [vmem:[%s2 + $0x198] sm:$0xff]
    %v143 = vld [vmem:[%s2 + $0x1a0] sm:$0xff]
    %v144 = vld [vmem:[%s2 + $0x1a8] sm:$0xff]
    %v145 = vld [vmem:[%s2 + $0x1b0] sm:$0xff]
    %v146 = vld [vmem:[%s2 + $0x1b8] sm:$0xff]
    %v147 = vld [vmem:[%s2 + $0x1c0] sm:$0xff]
    %v148 = vld [vmem:[%s2 + $0x1c8] sm:$0xff]
    %v149 = vld [vmem:[%s2 + $0x1d0] sm:$0xff]
    %v150 = vld [vmem:[%s2 + $0x1d8] sm:$0xff]
    %v151 = vld [vmem:[%s2 + $0x1e0] sm:$0xff]
    %v152 = vld [vmem:[%s2 + $0x1e8] sm:$0xff]
    %v153 = vld [vmem:[%s2 + $0x1f0] sm:$0xff]
    %v154 = vld [vmem:[%s2 + $0x1f8] sm:$0xff]
    %v155 = vld [vmem:[%s2 + $0x200] sm:$0xff]
    %v156 = vld [vmem:[%s2 + $0x208] sm:$0xff]
    %v157 = vld [vmem:[%s2 + $0x210] sm:$0xff]
    %v158 = vld [vmem:[%s2 + $0x218] sm:$0xff]
    %v159 = vld [vmem:[%s2 + $0x220] sm:$0xff]
    %v160 = vld [vmem:[%s2 + $0x228] sm:$0xff]
    %v161 = vld [vmem:[%s2 + $0x230] sm:$0xff]
    %v162 = vld [vmem:[%s2 + $0x238] sm:$0xff]
    %v163 = vld [vmem:[%s2 + $0x240] sm:$0xff]
    %v164 = vld [vmem:[%s2 + $0x248] sm:$0xff]
    %v165 = vld [vmem:[%s2 + $0x250] sm:$0xff]
    %v166 = vld [vmem:[%s2 + $0x258] sm:$0xff]
    %v167 = vld [vmem:[%s2 + $0x260] sm:$0xff]
    %v168 = vld [vmem:[%s2 + $0x268] sm:$0xff]
    %v169 = vld [vmem:[%s2 + $0x270] sm:$0xff]
    %v170 = vld [vmem:[%s2 + $0x278] sm:$0xff]
    %v171 = vld [vmem:[%s2 + $0x280] sm:$0xff]
    %v172 = vld [vmem:[%s2 + $0x288] sm:$0xff]
    %v173 = vld [vmem:[%s2 + $0x290] sm:$0xff]
    %v174 = vld [vmem:[%s2 + $0x298] sm:$0xff]
    %v175 = vld [vmem:[%s2 + $0x2a0] sm:$0xff]
    %v176 = vld [vmem:[%s2 + $0x2a8] sm:$0xff]
    %v177 = vld [vmem:[%s2 + $0x2b0] sm:$0xff]
    %v178 = vld [vmem:[%s2 + $0x2b8] sm:$0xff]
    %v179 = vld [vmem:[%s2 + $0x2c0] sm:$0xff]
    %v180 = vld [vmem:[%s2 + $0x2c8] sm:$0xff]
    %v181 = vld [vmem:[%s2 + $0x2d0] sm:$0xff]
    %v182 = vld [vmem:[%s2 + $0x2d8] sm:$0xff]
    %v183 = vld [vmem:[%s2 + $0x2e0] sm:$0xff]
    %v184 = vld [vmem:[%s2 + $0x2e8] sm:$0xff]
    %v185 = vld [vmem:[%s2 + $0x2f0] sm:$0xff]
    %v186 = vld [vmem:[%s2 + $0x2f8] sm:$0xff]
    %v187 = vld [vmem:[%s2 + $0x300] sm:$0xff]
    %v188 = vld [vmem:[%s2 + $0x308] sm:$0xff]
    %v189 = vld [vmem:[%s2 + $0x310] sm:$0xff]
    %v190 = vld [vmem:[%s2 + $0x318] sm:$0xff]
    %v191 = vld [vmem:[%s2 + $0x320] sm:$0xff]
    %v192 = vld [vmem:[%s2 + $0x328] sm:$0xff]
    %v193 = vld [vmem:[%s2 + $0x330] sm:$0xff]
    %v194 = vld [vmem:[%s2 + $0x338] sm:$0xff]
    %v195 = vld [vmem:[%s2 + $0x340] sm:$0xff]
    %v196 = vld [vmem:[%s2 + $0x348] sm:$0xff]
    %v197 = vld [vmem:[%s2 + $0x350] sm:$0xff]
    %v198 = vld [vmem:[%s2 + $0x358] sm:$0xff]
    %v199 = vld [vmem:[%s2 + $0x360] sm:$0xff]
    %v200 = vld [vmem:[%s2 + $0x368] sm:$0xff]
    %v201 = vld [vmem:[%s2 + $0x370] sm:$0xff]
    %v202 = vld [vmem:[%s2 + $0x378] sm:$0xff]
    %v203 = vld [vmem:[%s2 + $0x380] sm:$0xff]
    %v204 = vld [vmem:[%s2 + $0x388] sm:$0xff]
    %v205 = vld [vmem:[%s2 + $0x390] sm:$0xff]
    %v206 = vld [vmem:[%s2 + $0x398] sm:$0xff]
    %v207 = vld [vmem:[%s2 + $0x3a0] sm:$0xff]
    %v208 = vld [vmem:[%s2 + $0x3a8] sm:$0xff]
    %v209 = vld [vmem:[%s2 + $0x3b0] sm:$0xff]
    %v210 = vld [vmem:[%s2 + $0x3b8] sm:$0xff]
    %v211 = vld [vmem:[%s2 + $0x3c0] sm:$0xff]
    %v212 = vld [vmem:[%s2 + $0x3c8] sm:$0xff]
    %v213 = vld [vmem:[%s2 + $0x3d0] sm:$0xff]
    %v214 = vld [vmem:[%s2 + $0x3d8] sm:$0xff]
    %v215 = vld [vmem:[%s2 + $0x3e0] sm:$0xff]
    %v216 = vld [vmem:[%s2 + $0x3e8] sm:$0xff]
    %v217 = vld [vmem:[%s2 + $0x3f0] sm:$0xff]
    %v218 = vld [vmem:[%s2 + $0x3f8] sm:$0xff]
    %v219 = vpack.c.bf16 %v92, %v91
    %v220 = vpack.c.bf16 %v94, %v93
    %v221 = vpack.c.bf16 %v96, %v95
    %v222 = vpack.c.bf16 %v98, %v97
    %v223 = vpack.c.bf16 %v100, %v99
    %v224 = vpack.c.bf16 %v102, %v101
    %v225 = vpack.c.bf16 %v104, %v103
    %v226 = vpack.c.bf16 %v106, %v105
    %v227 = vpack.c.bf16 %v108, %v107
    %v228 = vpack.c.bf16 %v110, %v109
    %v229 = vpack.c.bf16 %v112, %v111
    %v230 = vpack.c.bf16 %v114, %v113
    %v231 = vpack.c.bf16 %v116, %v115
    %v232 = vpack.c.bf16 %v118, %v117
    %v233 = vpack.c.bf16 %v120, %v119
    %v234 = vpack.c.bf16 %v122, %v121
    %v235 = vpack.c.bf16 %v124, %v123
    %v236 = vpack.c.bf16 %v126, %v125
    %v237 = vpack.c.bf16 %v128, %v127
    %v238 = vpack.c.bf16 %v130, %v129
    %v239 = vpack.c.bf16 %v132, %v131
    %v240 = vpack.c.bf16 %v134, %v133
    %v241 = vpack.c.bf16 %v136, %v135
    %v242 = vpack.c.bf16 %v138, %v137
    %v243 = vpack.c.bf16 %v140, %v139
    %v244 = vpack.c.bf16 %v142, %v141
    %v245 = vpack.c.bf16 %v144, %v143
    %v246 = vpack.c.bf16 %v146, %v145
    %v247 = vpack.c.bf16 %v148, %v147
    %v248 = vpack.c.bf16 %v150, %v149
    %v249 = vpack.c.bf16 %v152, %v151
    %v250 = vpack.c.bf16 %v154, %v153
    %v251 = vpack.c.bf16 %v156, %v155
    %v252 = vpack.c.bf16 %v158, %v157
    %v253 = vpack.c.bf16 %v160, %v159
    %v254 = vpack.c.bf16 %v162, %v161
    %v255 = vpack.c.bf16 %v164, %v163
    %v256 = vpack.c.bf16 %v166, %v165
    %v257 = vpack.c.bf16 %v168, %v167
    %v258 = vpack.c.bf16 %v170, %v169
    %v259 = vpack.c.bf16 %v172, %v171
    %v260 = vpack.c.bf16 %v174, %v173
    %v261 = vpack.c.bf16 %v176, %v175
    %v262 = vpack.c.bf16 %v178, %v177
    %v263 = vpack.c.bf16 %v180, %v179
    %v264 = vpack.c.bf16 %v182, %v181
    %v265 = vpack.c.bf16 %v184, %v183
    %v266 = vpack.c.bf16 %v186, %v185
    %v267 = vpack.c.bf16 %v188, %v187
    %v268 = vpack.c.bf16 %v190, %v189
    %v269 = vpack.c.bf16 %v192, %v191
    %v270 = vpack.c.bf16 %v194, %v193
    %v271 = vpack.c.bf16 %v196, %v195
    %v272 = vpack.c.bf16 %v198, %v197
    %v273 = vpack.c.bf16 %v200, %v199
    %v274 = vpack.c.bf16 %v202, %v201
    %v275 = vpack.c.bf16 %v204, %v203
    %v276 = vpack.c.bf16 %v206, %v205
    %v277 = vpack.c.bf16 %v208, %v207
    %v278 = vpack.c.bf16 %v210, %v209
    %v279 = vpack.c.bf16 %v212, %v211
    %v280 = vpack.c.bf16 %v214, %v213
    %v281 = vpack.c.bf16 %v216, %v215
    %v282 = vpack.c.bf16 %v218, %v217
    %283 = vmatprep.subr.bf16.mxu0 0
    %284 = vmatpush1.bf16.msra.mxu0 %v219
    %285 = vmatprep.subr.bf16.mxu0 0
    %286 = vmatpush1.bf16.msra.mxu0 %v220
    %287 = vmatprep.subr.bf16.mxu0 0
    %288 = vmatpush1.bf16.msra.mxu0 %v221
    %289 = vmatprep.subr.bf16.mxu0 0
    %290 = vmatpush1.bf16.msra.mxu0 %v222
    %291 = vmatprep.subr.bf16.mxu0 0
    %292 = vmatpush1.bf16.msra.mxu0 %v223
    %293 = vmatprep.subr.bf16.mxu0 0
    %294 = vmatpush1.bf16.msra.mxu0 %v224
    %295 = vmatprep.subr.bf16.mxu0 0
    %296 = vmatpush1.bf16.msra.mxu0 %v225
    %297 = vmatprep.subr.bf16.mxu0 0
    %298 = vmatpush1.bf16.msra.mxu0 %v226
    %299 = vmatprep.subr.bf16.mxu0 0
    %300 = vmatpush1.bf16.msra.mxu0 %v227
    %301 = vmatprep.subr.bf16.mxu0 0
    %302 = vmatpush1.bf16.msra.mxu0 %v228
    %303 = vmatprep.subr.bf16.mxu0 0
    %304 = vmatpush1.bf16.msra.mxu0 %v229
    %305 = vmatprep.subr.bf16.mxu0 0
    %306 = vmatpush1.bf16.msra.mxu0 %v230
    %307 = vmatprep.subr.bf16.mxu0 0
    %308 = vmatpush1.bf16.msra.mxu0 %v231
    %309 = vmatprep.subr.bf16.mxu0 0
    %310 = vmatpush1.bf16.msra.mxu0 %v232
    %311 = vmatprep.subr.bf16.mxu0 0
    %312 = vmatpush1.bf16.msra.mxu0 %v233
    %313 = vmatprep.subr.bf16.mxu0 0
    %314 = vmatpush1.bf16.msra.mxu0 %v234
    %315 = vmatprep.mubr.bf16.mxu0 %v83
    %316 = vmatmul.mubr.bf16.gmra.mrb[0].mxu0 %v82
    %v317 = vpop.f32.mrb[0].mxu0
    %v318 = vadd.f32 0.0, %v317
    %v319 = vpop.f32.mrb[0].mxu0
    %v320 = vpop.f32.mrb[0].mxu0
    %v321 = vpop.f32.mrb[0].mxu0
    %322 = vdwg.mxu0
    %323 = vmatprep.subr.bf16.mxu0 0
    %324 = vmatpush1.bf16.msra.mxu0 %v235
    %325 = vmatprep.subr.bf16.mxu0 0
    %326 = vmatpush1.bf16.msra.mxu0 %v236
    %327 = vmatprep.subr.bf16.mxu0 0
    %328 = vmatpush1.bf16.msra.mxu0 %v237
    %329 = vmatprep.subr.bf16.mxu0 0
    %330 = vmatpush1.bf16.msra.mxu0 %v238
    %331 = vmatprep.subr.bf16.mxu0 0
    %332 = vmatpush1.bf16.msra.mxu0 %v239
    %333 = vmatprep.subr.bf16.mxu0 0
    %334 = vmatpush1.bf16.msra.mxu0 %v240
    %335 = vmatprep.subr.bf16.mxu0 0
    %336 = vmatpush1.bf16.msra.mxu0 %v241
    %337 = vmatprep.subr.bf16.mxu0 0
    %338 = vmatpush1.bf16.msra.mxu0 %v242
    %339 = vmatprep.subr.bf16.mxu0 0
    %340 = vmatpush1.bf16.msra.mxu0 %v243
    %341 = vmatprep.subr.bf16.mxu0 0
    %342 = vmatpush1.bf16.msra.mxu0 %v244
    %343 = vmatprep.subr.bf16.mxu0 0
    %344 = vmatpush1.bf16.msra.mxu0 %v245
    %345 = vmatprep.subr.bf16.mxu0 0
    %346 = vmatpush1.bf16.msra.mxu0 %v246
    %347 = vmatprep.subr.bf16.mxu0 0
    %348 = vmatpush1.bf16.msra.mxu0 %v247
    %349 = vmatprep.subr.bf16.mxu0 0
    %350 = vmatpush1.bf16.msra.mxu0 %v248
    %351 = vmatprep.subr.bf16.mxu0 0
    %352 = vmatpush1.bf16.msra.mxu0 %v249
    %353 = vmatprep.subr.bf16.mxu0 0
    %354 = vmatpush1.bf16.msra.mxu0 %v250
    %355 = vmatprep.mubr.bf16.mxu0 %v85
    %356 = vmatmul.mubr.bf16.gmra.mrb[0].mxu0 %v84
    %v357 = vpop.f32.mrb[0].mxu0
    %v358 = vadd.f32 %v318, %v357
    %v359 = vpop.f32.mrb[0].mxu0
    %v360 = vpop.f32.mrb[0].mxu0
    %v361 = vpop.f32.mrb[0].mxu0
    %362 = vdwg.mxu0
    %363 = vmatprep.subr.bf16.mxu0 0
    %364 = vmatpush1.bf16.msra.mxu0 %v251
    %365 = vmatprep.subr.bf16.mxu0 0
    %366 = vmatpush1.bf16.msra.mxu0 %v252
    %367 = vmatprep.subr.bf16.mxu0 0
    %368 = vmatpush1.bf16.msra.mxu0 %v253
    %369 = vmatprep.subr.bf16.mxu0 0
    %370 = vmatpush1.bf16.msra.mxu0 %v254
    %371 = vmatprep.subr.bf16.mxu0 0
    %372 = vmatpush1.bf16.msra.mxu0 %v255
    %373 = vmatprep.subr.bf16.mxu0 0
    %374 = vmatpush1.bf16.msra.mxu0 %v256
    %375 = vmatprep.subr.bf16.mxu0 0
    %376 = vmatpush1.bf16.msra.mxu0 %v257
    %377 = vmatprep.subr.bf16.mxu0 0
    %378 = vmatpush1.bf16.msra.mxu0 %v258
    %379 = vmatprep.subr.bf16.mxu0 0
    %380 = vmatpush1.bf16.msra.mxu0 %v259
    %381 = vmatprep.subr.bf16.mxu0 0
    %382 = vmatpush1.bf16.msra.mxu0 %v260
    %383 = vmatprep.subr.bf16.mxu0 0
    %384 = vmatpush1.bf16.msra.mxu0 %v261
    %385 = vmatprep.subr.bf16.mxu0 0
    %386 = vmatpush1.bf16.msra.mxu0 %v262
    %387 = vmatprep.subr.bf16.mxu0 0
    %388 = vmatpush1.bf16.msra.mxu0 %v263
    %389 = vmatprep.subr.bf16.mxu0 0
    %390 = vmatpush1.bf16.msra.mxu0 %v264
    %391 = vmatprep.subr.bf16.mxu0 0
    %392 = vmatpush1.bf16.msra.mxu0 %v265
    %393 = vmatprep.subr.bf16.mxu0 0
    %394 = vmatpush1.bf16.msra.mxu0 %v266
    %395 = vmatprep.mubr.bf16.mxu0 %v87
    %396 = vmatmul.mubr.bf16.gmra.mrb[0].mxu0 %v86
    %v397 = vpop.f32.mrb[0].mxu0
    %v398 = vadd.f32 %v358, %v397
    %v399 = vpop.f32.mrb[0].mxu0
    %v400 = vpop.f32.mrb[0].mxu0
    %v401 = vpop.f32.mrb[0].mxu0
    %402 = vdwg.mxu0
    %403 = vmatprep.subr.bf16.mxu0 0
    %404 = vmatpush1.bf16.msra.mxu0 %v267
    %405 = vmatprep.subr.bf16.mxu0 0
    %406 = vmatpush1.bf16.msra.mxu0 %v268
    %407 = vmatprep.subr.bf16.mxu0 0
    %408 = vmatpush1.bf16.msra.mxu0 %v269
    %409 = vmatprep.subr.bf16.mxu0 0
    %410 = vmatpush1.bf16.msra.mxu0 %v270
    %411 = vmatprep.subr.bf16.mxu0 0
    %412 = vmatpush1.bf16.msra.mxu0 %v271
    %413 = vmatprep.subr.bf16.mxu0 0
    %414 = vmatpush1.bf16.msra.mxu0 %v272
    %415 = vmatprep.subr.bf16.mxu0 0
    %416 = vmatpush1.bf16.msra.mxu0 %v273
    %417 = vmatprep.subr.bf16.mxu0 0
    %418 = vmatpush1.bf16.msra.mxu0 %v274
    %419 = vmatprep.subr.bf16.mxu0 0
    %420 = vmatpush1.bf16.msra.mxu0 %v275
    %421 = vmatprep.subr.bf16.mxu0 0
    %422 = vmatpush1.bf16.msra.mxu0 %v276
    %423 = vmatprep.subr.bf16.mxu0 0
    %424 = vmatpush1.bf16.msra.mxu0 %v277
    %425 = vmatprep.subr.bf16.mxu0 0
    %426 = vmatpush1.bf16.msra.mxu0 %v278
    %427 = vmatprep.subr.bf16.mxu0 0
    %428 = vmatpush1.bf16.msra.mxu0 %v279
    %429 = vmatprep.subr.bf16.mxu0 0
    %430 = vmatpush1.bf16.msra.mxu0 %v280
    %431 = vmatprep.subr.bf16.mxu0 0
    %432 = vmatpush1.bf16.msra.mxu0 %v281
    %433 = vmatprep.subr.bf16.mxu0 0
    %434 = vmatpush1.bf16.msra.mxu0 %v282
    %435 = vmatprep.mubr.bf16.mxu0 %v89
    %436 = vmatmul.mubr.bf16.gmra.mrb[0].mxu0 %v88
    %v437 = vpop.f32.mrb[0].mxu0
    %v438 = vadd.f32 %v398, %v437
    %v439 = vpop.f32.mrb[0].mxu0
    %v440 = vpop.f32.mrb[0].mxu0
    %v441 = vpop.f32.mrb[0].mxu0
    %442 = vdwg.mxu0
    %v443 = vadd.f32 %v90, %v438
    %vm444 = vcmask 74752
    %445 = vst.msk [vmem:[#allocation2] sm:$0x3] %vm444, %v443
    %v446 = vld [vmem:[#allocation3] sm:$0x3]
    %v447 = vld [vmem:[%s3] sm:$0xff]
    %v448 = vld [vmem:[%s3 + $0x8] sm:$0xff]
    %v449 = vld [vmem:[%s3 + $0x10] sm:$0xff]
    %v450 = vld [vmem:[%s3 + $0x18] sm:$0xff]
    %v451 = vld [vmem:[%s3 + $0x20] sm:$0xff]
    %v452 = vld [vmem:[%s3 + $0x28] sm:$0xff]
    %v453 = vld [vmem:[%s3 + $0x30] sm:$0xff]
    %v454 = vld [vmem:[%s3 + $0x38] sm:$0xff]
    %v455 = vld [vmem:[%s3 + $0x40] sm:$0xff]
    %v456 = vld [vmem:[%s3 + $0x48] sm:$0xff]
    %v457 = vld [vmem:[%s3 + $0x50] sm:$0xff]
    %v458 = vld [vmem:[%s3 + $0x58] sm:$0xff]
    %v459 = vld [vmem:[%s3 + $0x60] sm:$0xff]
    %v460 = vld [vmem:[%s3 + $0x68] sm:$0xff]
    %v461 = vld [vmem:[%s3 + $0x70] sm:$0xff]
    %v462 = vld [vmem:[%s3 + $0x78] sm:$0xff]
    %v463 = vld [vmem:[%s3 + $0x80] sm:$0xff]
    %v464 = vld [vmem:[%s3 + $0x88] sm:$0xff]
    %v465 = vld [vmem:[%s3 + $0x90] sm:$0xff]
    %v466 = vld [vmem:[%s3 + $0x98] sm:$0xff]
    %v467 = vld [vmem:[%s3 + $0xa0] sm:$0xff]
    %v468 = vld [vmem:[%s3 + $0xa8] sm:$0xff]
    %v469 = vld [vmem:[%s3 + $0xb0] sm:$0xff]
    %v470 = vld [vmem:[%s3 + $0xb8] sm:$0xff]
    %v471 = vld [vmem:[%s3 + $0xc0] sm:$0xff]
    %v472 = vld [vmem:[%s3 + $0xc8] sm:$0xff]
    %v473 = vld [vmem:[%s3 + $0xd0] sm:$0xff]
    %v474 = vld [vmem:[%s3 + $0xd8] sm:$0xff]
    %v475 = vld [vmem:[%s3 + $0xe0] sm:$0xff]
    %v476 = vld [vmem:[%s3 + $0xe8] sm:$0xff]
    %v477 = vld [vmem:[%s3 + $0xf0] sm:$0xff]
    %v478 = vld [vmem:[%s3 + $0xf8] sm:$0xff]
    %v479 = vld [vmem:[%s3 + $0x100] sm:$0xff]
    %v480 = vld [vmem:[%s3 + $0x108] sm:$0xff]
    %v481 = vld [vmem:[%s3 + $0x110] sm:$0xff]
    %v482 = vld [vmem:[%s3 + $0x118] sm:$0xff]
    %v483 = vld [vmem:[%s3 + $0x120] sm:$0xff]
    %v484 = vld [vmem:[%s3 + $0x128] sm:$0xff]
    %v485 = vld [vmem:[%s3 + $0x130] sm:$0xff]
    %v486 = vld [vmem:[%s3 + $0x138] sm:$0xff]
    %v487 = vld [vmem:[%s3 + $0x140] sm:$0xff]
    %v488 = vld [vmem:[%s3 + $0x148] sm:$0xff]
    %v489 = vld [vmem:[%s3 + $0x150] sm:$0xff]
    %v490 = vld [vmem:[%s3 + $0x158] sm:$0xff]
    %v491 = vld [vmem:[%s3 + $0x160] sm:$0xff]
    %v492 = vld [vmem:[%s3 + $0x168] sm:$0xff]
    %v493 = vld [vmem:[%s3 + $0x170] sm:$0xff]
    %v494 = vld [vmem:[%s3 + $0x178] sm:$0xff]
    %v495 = vld [vmem:[%s3 + $0x180] sm:$0xff]
    %v496 = vld [vmem:[%s3 + $0x188] sm:$0xff]
    %v497 = vld [vmem:[%s3 + $0x190] sm:$0xff]
    %v498 = vld [vmem:[%s3 + $0x198] sm:$0xff]
    %v499 = vld [vmem:[%s3 + $0x1a0] sm:$0xff]
    %v500 = vld [vmem:[%s3 + $0x1a8] sm:$0xff]
    %v501 = vld [vmem:[%s3 + $0x1b0] sm:$0xff]
    %v502 = vld [vmem:[%s3 + $0x1b8] sm:$0xff]
    %v503 = vld [vmem:[%s3 + $0x1c0] sm:$0xff]
    %v504 = vld [vmem:[%s3 + $0x1c8] sm:$0xff]
    %v505 = vld [vmem:[%s3 + $0x1d0] sm:$0xff]
    %v506 = vld [vmem:[%s3 + $0x1d8] sm:$0xff]
    %v507 = vld [vmem:[%s3 + $0x1e0] sm:$0xff]
    %v508 = vld [vmem:[%s3 + $0x1e8] sm:$0xff]
    %v509 = vld [vmem:[%s3 + $0x1f0] sm:$0xff]
    %v510 = vld [vmem:[%s3 + $0x1f8] sm:$0xff]
    %v511 = vld [vmem:[%s3 + $0x200] sm:$0xff]
    %v512 = vld [vmem:[%s3 + $0x208] sm:$0xff]
    %v513 = vld [vmem:[%s3 + $0x210] sm:$0xff]
    %v514 = vld [vmem:[%s3 + $0x218] sm:$0xff]
    %v515 = vld [vmem:[%s3 + $0x220] sm:$0xff]
    %v516 = vld [vmem:[%s3 + $0x228] sm:$0xff]
    %v517 = vld [vmem:[%s3 + $0x230] sm:$0xff]
    %v518 = vld [vmem:[%s3 + $0x238] sm:$0xff]
    %v519 = vld [vmem:[%s3 + $0x240] sm:$0xff]
    %v520 = vld [vmem:[%s3 + $0x248] sm:$0xff]
    %v521 = vld [vmem:[%s3 + $0x250] sm:$0xff]
    %v522 = vld [vmem:[%s3 + $0x258] sm:$0xff]
    %v523 = vld [vmem:[%s3 + $0x260] sm:$0xff]
    %v524 = vld [vmem:[%s3 + $0x268] sm:$0xff]
    %v525 = vld [vmem:[%s3 + $0x270] sm:$0xff]
    %v526 = vld [vmem:[%s3 + $0x278] sm:$0xff]
    %v527 = vld [vmem:[%s3 + $0x280] sm:$0xff]
    %v528 = vld [vmem:[%s3 + $0x288] sm:$0xff]
    %v529 = vld [vmem:[%s3 + $0x290] sm:$0xff]
    %v530 = vld [vmem:[%s3 + $0x298] sm:$0xff]
    %v531 = vld [vmem:[%s3 + $0x2a0] sm:$0xff]
    %v532 = vld [vmem:[%s3 + $0x2a8] sm:$0xff]
    %v533 = vld [vmem:[%s3 + $0x2b0] sm:$0xff]
    %v534 = vld [vmem:[%s3 + $0x2b8] sm:$0xff]
    %v535 = vld [vmem:[%s3 + $0x2c0] sm:$0xff]
    %v536 = vld [vmem:[%s3 + $0x2c8] sm:$0xff]
    %v537 = vld [vmem:[%s3 + $0x2d0] sm:$0xff]
    %v538 = vld [vmem:[%s3 + $0x2d8] sm:$0xff]
    %v539 = vld [vmem:[%s3 + $0x2e0] sm:$0xff]
    %v540 = vld [vmem:[%s3 + $0x2e8] sm:$0xff]
    %v541 = vld [vmem:[%s3 + $0x2f0] sm:$0xff]
    %v542 = vld [vmem:[%s3 + $0x2f8] sm:$0xff]
    %v543 = vld [vmem:[%s3 + $0x300] sm:$0xff]
    %v544 = vld [vmem:[%s3 + $0x308] sm:$0xff]
    %v545 = vld [vmem:[%s3 + $0x310] sm:$0xff]
    %v546 = vld [vmem:[%s3 + $0x318] sm:$0xff]
    %v547 = vld [vmem:[%s3 + $0x320] sm:$0xff]
    %v548 = vld [vmem:[%s3 + $0x328] sm:$0xff]
    %v549 = vld [vmem:[%s3 + $0x330] sm:$0xff]
    %v550 = vld [vmem:[%s3 + $0x338] sm:$0xff]
    %v551 = vld [vmem:[%s3 + $0x340] sm:$0xff]
    %v552 = vld [vmem:[%s3 + $0x348] sm:$0xff]
    %v553 = vld [vmem:[%s3 + $0x350] sm:$0xff]
    %v554 = vld [vmem:[%s3 + $0x358] sm:$0xff]
    %v555 = vld [vmem:[%s3 + $0x360] sm:$0xff]
    %v556 = vld [vmem:[%s3 + $0x368] sm:$0xff]
    %v557 = vld [vmem:[%s3 + $0x370] sm:$0xff]
    %v558 = vld [vmem:[%s3 + $0x378] sm:$0xff]
    %v559 = vld [vmem:[%s3 + $0x380] sm:$0xff]
    %v560 = vld [vmem:[%s3 + $0x388] sm:$0xff]
    %v561 = vld [vmem:[%s3 + $0x390] sm:$0xff]
    %v562 = vld [vmem:[%s3 + $0x398] sm:$0xff]
    %v563 = vld [vmem:[%s3 + $0x3a0] sm:$0xff]
    %v564 = vld [vmem:[%s3 + $0x3a8] sm:$0xff]
    %v565 = vld [vmem:[%s3 + $0x3b0] sm:$0xff]
    %v566 = vld [vmem:[%s3 + $0x3b8] sm:$0xff]
    %v567 = vld [vmem:[%s3 + $0x3c0] sm:$0xff]
    %v568 = vld [vmem:[%s3 + $0x3c8] sm:$0xff]
    %v569 = vld [vmem:[%s3 + $0x3d0] sm:$0xff]
    %v570 = vld [vmem:[%s3 + $0x3d8] sm:$0xff]
    %v571 = vld [vmem:[%s3 + $0x3e0] sm:$0xff]
    %v572 = vld [vmem:[%s3 + $0x3e8] sm:$0xff]
    %v573 = vld [vmem:[%s3 + $0x3f0] sm:$0xff]
    %v574 = vld [vmem:[%s3 + $0x3f8] sm:$0xff]
    %v575 = vpack.c.bf16 %v448, %v447
    %v576 = vpack.c.bf16 %v450, %v449
    %v577 = vpack.c.bf16 %v452, %v451
    %v578 = vpack.c.bf16 %v454, %v453
    %v579 = vpack.c.bf16 %v456, %v455
    %v580 = vpack.c.bf16 %v458, %v457
    %v581 = vpack.c.bf16 %v460, %v459
    %v582 = vpack.c.bf16 %v462, %v461
    %v583 = vpack.c.bf16 %v464, %v463
    %v584 = vpack.c.bf16 %v466, %v465
    %v585 = vpack.c.bf16 %v468, %v467
    %v586 = vpack.c.bf16 %v470, %v469
    %v587 = vpack.c.bf16 %v472, %v471
    %v588 = vpack.c.bf16 %v474, %v473
    %v589 = vpack.c.bf16 %v476, %v475
    %v590 = vpack.c.bf16 %v478, %v477
    %v591 = vpack.c.bf16 %v480, %v479
    %v592 = vpack.c.bf16 %v482, %v481
    %v593 = vpack.c.bf16 %v484, %v483
    %v594 = vpack.c.bf16 %v486, %v485
    %v595 = vpack.c.bf16 %v488, %v487
    %v596 = vpack.c.bf16 %v490, %v489
    %v597 = vpack.c.bf16 %v492, %v491
    %v598 = vpack.c.bf16 %v494, %v493
    %v599 = vpack.c.bf16 %v496, %v495
    %v600 = vpack.c.bf16 %v498, %v497
    %v601 = vpack.c.bf16 %v500, %v499
    %v602 = vpack.c.bf16 %v502, %v501
    %v603 = vpack.c.bf16 %v504, %v503
    %v604 = vpack.c.bf16 %v506, %v505
    %v605 = vpack.c.bf16 %v508, %v507
    %v606 = vpack.c.bf16 %v510, %v509
    %v607 = vpack.c.bf16 %v512, %v511
    %v608 = vpack.c.bf16 %v514, %v513
    %v609 = vpack.c.bf16 %v516, %v515
    %v610 = vpack.c.bf16 %v518, %v517
    %v611 = vpack.c.bf16 %v520, %v519
    %v612 = vpack.c.bf16 %v522, %v521
    %v613 = vpack.c.bf16 %v524, %v523
    %v614 = vpack.c.bf16 %v526, %v525
    %v615 = vpack.c.bf16 %v528, %v527
    %v616 = vpack.c.bf16 %v530, %v529
    %v617 = vpack.c.bf16 %v532, %v531
    %v618 = vpack.c.bf16 %v534, %v533
    %v619 = vpack.c.bf16 %v536, %v535
    %v620 = vpack.c.bf16 %v538, %v537
    %v621 = vpack.c.bf16 %v540, %v539
    %v622 = vpack.c.bf16 %v542, %v541
    %v623 = vpack.c.bf16 %v544, %v543
    %v624 = vpack.c.bf16 %v546, %v545
    %v625 = vpack.c.bf16 %v548, %v547
    %v626 = vpack.c.bf16 %v550, %v549
    %v627 = vpack.c.bf16 %v552, %v551
    %v628 = vpack.c.bf16 %v554, %v553
    %v629 = vpack.c.bf16 %v556, %v555
    %v630 = vpack.c.bf16 %v558, %v557
    %v631 = vpack.c.bf16 %v560, %v559
    %v632 = vpack.c.bf16 %v562, %v561
    %v633 = vpack.c.bf16 %v564, %v563
    %v634 = vpack.c.bf16 %v566, %v565
    %v635 = vpack.c.bf16 %v568, %v567
    %v636 = vpack.c.bf16 %v570, %v569
    %v637 = vpack.c.bf16 %v572, %v571
    %v638 = vpack.c.bf16 %v574, %v573
    %639 = vmatprep.subr.bf16.mxu0 0
    %640 = vmatpush1.bf16.msra.mxu0 %v575
    %641 = vmatprep.subr.bf16.mxu0 0
    %642 = vmatpush1.bf16.msra.mxu0 %v576
    %643 = vmatprep.subr.bf16.mxu0 0
    %644 = vmatpush1.bf16.msra.mxu0 %v577
    %645 = vmatprep.subr.bf16.mxu0 0
    %646 = vmatpush1.bf16.msra.mxu0 %v578
    %647 = vmatprep.subr.bf16.mxu0 0
    %648 = vmatpush1.bf16.msra.mxu0 %v579
    %649 = vmatprep.subr.bf16.mxu0 0
    %650 = vmatpush1.bf16.msra.mxu0 %v580
    %651 = vmatprep.subr.bf16.mxu0 0
    %652 = vmatpush1.bf16.msra.mxu0 %v581
    %653 = vmatprep.subr.bf16.mxu0 0
    %654 = vmatpush1.bf16.msra.mxu0 %v582
    %655 = vmatprep.subr.bf16.mxu0 0
    %656 = vmatpush1.bf16.msra.mxu0 %v583
    %657 = vmatprep.subr.bf16.mxu0 0
    %658 = vmatpush1.bf16.msra.mxu0 %v584
    %659 = vmatprep.subr.bf16.mxu0 0
    %660 = vmatpush1.bf16.msra.mxu0 %v585
    %661 = vmatprep.subr.bf16.mxu0 0
    %662 = vmatpush1.bf16.msra.mxu0 %v586
    %663 = vmatprep.subr.bf16.mxu0 0
    %664 = vmatpush1.bf16.msra.mxu0 %v587
    %665 = vmatprep.subr.bf16.mxu0 0
    %666 = vmatpush1.bf16.msra.mxu0 %v588
    %667 = vmatprep.subr.bf16.mxu0 0
    %668 = vmatpush1.bf16.msra.mxu0 %v589
    %669 = vmatprep.subr.bf16.mxu0 0
    %670 = vmatpush1.bf16.msra.mxu0 %v590
    %671 = vmatprep.mubr.bf16.mxu0 %v83
    %672 = vmatmul.mubr.bf16.gmra.mrb[0].mxu0 %v82
    %v673 = vpop.f32.mrb[0].mxu0
    %v674 = vadd.f32 0.0, %v673
    %v675 = vpop.f32.mrb[0].mxu0
    %v676 = vpop.f32.mrb[0].mxu0
    %v677 = vpop.f32.mrb[0].mxu0
    %678 = vdwg.mxu0
    %679 = vmatprep.subr.bf16.mxu0 0
    %680 = vmatpush1.bf16.msra.mxu0 %v591
    %681 = vmatprep.subr.bf16.mxu0 0
    %682 = vmatpush1.bf16.msra.mxu0 %v592
    %683 = vmatprep.subr.bf16.mxu0 0
    %684 = vmatpush1.bf16.msra.mxu0 %v593
    %685 = vmatprep.subr.bf16.mxu0 0
    %686 = vmatpush1.bf16.msra.mxu0 %v594
    %687 = vmatprep.subr.bf16.mxu0 0
    %688 = vmatpush1.bf16.msra.mxu0 %v595
    %689 = vmatprep.subr.bf16.mxu0 0
    %690 = vmatpush1.bf16.msra.mxu0 %v596
    %691 = vmatprep.subr.bf16.mxu0 0
    %692 = vmatpush1.bf16.msra.mxu0 %v597
    %693 = vmatprep.subr.bf16.mxu0 0
    %694 = vmatpush1.bf16.msra.mxu0 %v598
    %695 = vmatprep.subr.bf16.mxu0 0
    %696 = vmatpush1.bf16.msra.mxu0 %v599
    %697 = vmatprep.subr.bf16.mxu0 0
    %698 = vmatpush1.bf16.msra.mxu0 %v600
    %699 = vmatprep.subr.bf16.mxu0 0
    %700 = vmatpush1.bf16.msra.mxu0 %v601
    %701 = vmatprep.subr.bf16.mxu0 0
    %702 = vmatpush1.bf16.msra.mxu0 %v602
    %703 = vmatprep.subr.bf16.mxu0 0
    %704 = vmatpush1.bf16.msra.mxu0 %v603
    %705 = vmatprep.subr.bf16.mxu0 0
    %706 = vmatpush1.bf16.msra.mxu0 %v604
    %707 = vmatprep.subr.bf16.mxu0 0
    %708 = vmatpush1.bf16.msra.mxu0 %v605
    %709 = vmatprep.subr.bf16.mxu0 0
    %710 = vmatpush1.bf16.msra.mxu0 %v606
    %711 = vmatprep.mubr.bf16.mxu0 %v85
    %712 = vmatmul.mubr.bf16.gmra.mrb[0].mxu0 %v84
    %v713 = vpop.f32.mrb[0].mxu0
    %v714 = vadd.f32 %v674, %v713
    %v715 = vpop.f32.mrb[0].mxu0
    %v716 = vpop.f32.mrb[0].mxu0
    %v717 = vpop.f32.mrb[0].mxu0
    %718 = vdwg.mxu0
    %719 = vmatprep.subr.bf16.mxu0 0
    %720 = vmatpush1.bf16.msra.mxu0 %v607
    %721 = vmatprep.subr.bf16.mxu0 0
    %722 = vmatpush1.bf16.msra.mxu0 %v608
    %723 = vmatprep.subr.bf16.mxu0 0
    %724 = vmatpush1.bf16.msra.mxu0 %v609
    %725 = vmatprep.subr.bf16.mxu0 0
    %726 = vmatpush1.bf16.msra.mxu0 %v610
    %727 = vmatprep.subr.bf16.mxu0 0
    %728 = vmatpush1.bf16.msra.mxu0 %v611
    %729 = vmatprep.subr.bf16.mxu0 0
    %730 = vmatpush1.bf16.msra.mxu0 %v612
    %731 = vmatprep.subr.bf16.mxu0 0
    %732 = vmatpush1.bf16.msra.mxu0 %v613
    %733 = vmatprep.subr.bf16.mxu0 0
    %734 = vmatpush1.bf16.msra.mxu0 %v614
    %735 = vmatprep.subr.bf16.mxu0 0
    %736 = vmatpush1.bf16.msra.mxu0 %v615
    %737 = vmatprep.subr.bf16.mxu0 0
    %738 = vmatpush1.bf16.msra.mxu0 %v616
    %739 = vmatprep.subr.bf16.mxu0 0
    %740 = vmatpush1.bf16.msra.mxu0 %v617
    %741 = vmatprep.subr.bf16.mxu0 0
    %742 = vmatpush1.bf16.msra.mxu0 %v618
    %743 = vmatprep.subr.bf16.mxu0 0
    %744 = vmatpush1.bf16.msra.mxu0 %v619
    %745 = vmatprep.subr.bf16.mxu0 0
    %746 = vmatpush1.bf16.msra.mxu0 %v620
    %747 = vmatprep.subr.bf16.mxu0 0
    %748 = vmatpush1.bf16.msra.mxu0 %v621
    %749 = vmatprep.subr.bf16.mxu0 0
    %750 = vmatpush1.bf16.msra.mxu0 %v622
    %751 = vmatprep.mubr.bf16.mxu0 %v87
    %752 = vmatmul.mubr.bf16.gmra.mrb[0].mxu0 %v86
    %v753 = vpop.f32.mrb[0].mxu0
    %v754 = vadd.f32 %v714, %v753
    %v755 = vpop.f32.mrb[0].mxu0
    %v756 = vpop.f32.mrb[0].mxu0
    %v757 = vpop.f32.mrb[0].mxu0
    %758 = vdwg.mxu0
    %759 = vmatprep.subr.bf16.mxu0 0
    %760 = vmatpush1.bf16.msra.mxu0 %v623
    %761 = vmatprep.subr.bf16.mxu0 0
    %762 = vmatpush1.bf16.msra.mxu0 %v624
    %763 = vmatprep.subr.bf16.mxu0 0
    %764 = vmatpush1.bf16.msra.mxu0 %v625
    %765 = vmatprep.subr.bf16.mxu0 0
    %766 = vmatpush1.bf16.msra.mxu0 %v626
    %767 = vmatprep.subr.bf16.mxu0 0
    %768 = vmatpush1.bf16.msra.mxu0 %v627
    %769 = vmatprep.subr.bf16.mxu0 0
    %770 = vmatpush1.bf16.msra.mxu0 %v628
    %771 = vmatprep.subr.bf16.mxu0 0
    %772 = vmatpush1.bf16.msra.mxu0 %v629
    %773 = vmatprep.subr.bf16.mxu0 0
    %774 = vmatpush1.bf16.msra.mxu0 %v630
    %775 = vmatprep.subr.bf16.mxu0 0
    %776 = vmatpush1.bf16.msra.mxu0 %v631
    %777 = vmatprep.subr.bf16.mxu0 0
    %778 = vmatpush1.bf16.msra.mxu0 %v632
    %779 = vmatprep.subr.bf16.mxu0 0
    %780 = vmatpush1.bf16.msra.mxu0 %v633
    %781 = vmatprep.subr.bf16.mxu0 0
    %782 = vmatpush1.bf16.msra.mxu0 %v634
    %783 = vmatprep.subr.bf16.mxu0 0
    %784 = vmatpush1.bf16.msra.mxu0 %v635
    %785 = vmatprep.subr.bf16.mxu0 0
    %786 = vmatpush1.bf16.msra.mxu0 %v636
    %787 = vmatprep.subr.bf16.mxu0 0
    %788 = vmatpush1.bf16.msra.mxu0 %v637
    %789 = vmatprep.subr.bf16.mxu0 0
    %790 = vmatpush1.bf16.msra.mxu0 %v638
    %791 = vmatprep.mubr.bf16.mxu0 %v89
    %792 = vmatmul.mubr.bf16.gmra.mrb[0].mxu0 %v88
    %v793 = vpop.f32.mrb[0].mxu0
    %v794 = vadd.f32 %v754, %v793
    %v795 = vpop.f32.mrb[0].mxu0
    %v796 = vpop.f32.mrb[0].mxu0
    %v797 = vpop.f32.mrb[0].mxu0
    %798 = vdwg.mxu0
    %v799 = vadd.f32 %v446, %v794
    %800 = vst.msk [vmem:[#allocation3] sm:$0x3] %vm444, %v799
    // Predicated region
    $region26: #{tpu_custom_call.1} parent=1 // pred_check
      %p801 = pneg %p29
    $region27: #{tpu_custom_call.1} parent=1 // pred_check_branch
      %803 = sbr.rel (%p801) target = $region29
    $region28: #{tpu_custom_call.1} parent=1 // pred_region
      %v804 = vld [vmem:[#allocation2] sm:$0x3]
      %v805 = vld [vmem:[%s4] sm:$0x1]
      %v807 = vlaneseq
      %v808 = vshrl.u32 %v807, 7
      %v809 = vsub.s32 0, %v808
      %v810 = vrot.slane %v805, %v809
      %v812 = vadd.f32 %v804, %v810
      %v813 = vld [vmem:[#allocation3] sm:$0x3]
      %v814 = vld [vmem:[%s5] sm:$0x1]
      %v816 = vlaneseq
      %v817 = vshrl.u32 %v816, 7
      %v818 = vsub.s32 0, %v817
      %v819 = vrot.slane %v814, %v818
      %v821 = vadd.f32 %v813, %v819
      %v822 = vmul.f32 %v812, 0.5
      %v823 = vsel %vm444, %v822, -inf
      %824 = vmax.xlane.f32.xlu0 %v823
      %v825 = vpop.xlane.xlu0 %824
      %v826 = vsub.f32 %v822, %v825
      %v827 = vmul.f32 %v826, 1.442695
      %v828 = vpow.pop %v827
      %v829 = vsel %vm444, %v828, 0.0
      %830 = vadd.xlane.f32.xlu0 %v829
      %v831 = vpop.xlane.xlu0 %830
      %v832 = vlog2.pop %v831
      %v833 = vmul.f32 %v832, 0.6931472
      %v834 = vsub.f32 %v826, %v833
      %v835 = vmul.f32 %v834, 1.442695
      %v836 = vpow.pop %v835
      %v837 = vmul.f32 %v821, 0.5
      %v838 = vsel %vm444, %v837, -inf
      %839 = vmax.xlane.f32.xlu0 %v838
      %v840 = vpop.xlane.xlu0 %839
      %v841 = vsub.f32 %v837, %v840
      %v842 = vmul.f32 %v841, 1.442695
      %v843 = vpow.pop %v842
      %v844 = vsel %vm444, %v843, 0.0
      %845 = vadd.xlane.f32.xlu0 %v844
      %v846 = vpop.xlane.xlu0 %845
      %v847 = vlog2.pop %v846
      %v848 = vmul.f32 %v847, 0.6931472
      %v849 = vsub.f32 %v841, %v848
      %v850 = vsub.f32 %v834, %v849
      %v851 = vmul.f32 %v836, %v850
      %v852 = vsel %vm444, %v851, 0.0
      %853 = vadd.xlane.f32.xlu0 %v852
      %v854 = vpop.xlane.xlu0 %853
      %v855 = vrot.slane %v854, 4
      %v856 = vadd.f32 %v854, %v855
      %v857 = vrot.slane %v856, 2
      %v858 = vadd.f32 %v856, %v857
      %v859 = vrot.slane %v858, 1
      %v860 = vadd.f32 %v858, %v859
      %s861 = vtos %v860
      %s862 = smul.f32 %s861, 0.5
      %s863 = smul.f32 %s862, 4.0
      %v864 = vlaneseq
      %v865 = vand.u32 %v864, 127
      %v866 = vlaneseq
      %v867 = vshrl.u32 %v866, 7
      %vm868 = vcmp.eq.s32.totalorder %v867, 0
      %s869 = sld [smem:[#allocation5]]
      %v870 = vstv %s869
      %vm871 = vcmp.eq.s32.totalorder %v865, %v870
      %vm872 = vmand %vm868, %vm871
      %v873 = vsel %vm872, 1.0, 0.0
      %v874 = vadd.f32 %v873, 0.0
      %vm875 = vcmp.eq.s32.totalorder %v867, 1
      %s876 = sld [smem:[#allocation5 + $0x1]]
      %v877 = vstv %s876
      %vm878 = vcmp.eq.s32.totalorder %v865, %v877
      %vm879 = vmand %vm875, %vm878
      %v880 = vsel %vm879, 1.0, 0.0
      %v881 = vadd.f32 %v874, %v880
      %v882 = vsel %vm444, %v821, -inf
      %883 = vmax.xlane.f32.xlu0 %v882
      %v884 = vpop.xlane.xlu0 %883
      %v885 = vsub.f32 %v821, %v884
      %v886 = vmul.f32 %v885, 1.442695
      %v887 = vpow.pop %v886
      %v888 = vsel %vm444, %v887, 0.0
      %889 = vadd.xlane.f32.xlu0 %v888
      %v890 = vpop.xlane.xlu0 %889
      %v891 = vlog2.pop %v890
      %v892 = vmul.f32 %v891, 0.6931472
      %v893 = vsub.f32 %v885, %v892
      %v894 = vmul.f32 %v881, %v893
      %v895 = vsel %vm444, %v894, 0.0
      %896 = vadd.xlane.f32.xlu0 %v895
      %v897 = vpop.xlane.xlu0 %896
      %v898 = vrot.slane %v897, 4
      %v899 = vadd.f32 %v897, %v898
      %v900 = vrot.slane %v899, 2
      %v901 = vadd.f32 %v899, %v900
      %v902 = vrot.slane %v901, 1
      %v903 = vadd.f32 %v901, %v902
      %s904 = vtos %v903
      %s905 = ssub.f32 0.0, %s904
      %s906 = smul.f32 %s905, 0.5
      %s907 = smul.f32 %s906, 0.5
      %s908 = smul.f32 %s863, 0.5
      %s909 = sadd.f32 %s907, %s908
      %v910 = vstv %s909
      %vm911 = vcmask 0
      %912 = vst.msk [vmem:[#allocation6] sm:$0x1] %vm911, %v910
    $region29: #{tpu_custom_call.1} parent=1 // pred_fallthru
      _
    // Predicated region
    $region30: #{tpu_custom_call.1} parent=1 // pred_check
      _
    $region31: #{tpu_custom_call.1} parent=1 // pred_check_branch
      %914 = sbr.rel (0) target = $region33
    $region32: #{tpu_custom_call.1} parent=1 // pred_region
      %s916 = ssub.s32 16, 16
      %917 = vsyncadd [#allocation7], %s916
      %s919 = sshll.u32 [#allocation6], 4
      %s920 = int_to_ptr.vmem [resolvable:$true] %s919
      %922 = dma.vmem_to_hbm [thread:$0]  %s920, 16, %s6, [#allocation7]
    $region33: #{tpu_custom_call.1} parent=1 // pred_fallthru
      _
    // Predicated region
    $region34: #{tpu_custom_call.1} parent=1 // pred_check
      _
    $region35: #{tpu_custom_call.1} parent=1 // pred_check_branch
      %924 = sbr.rel (0) target = $region37
    $region36: #{tpu_custom_call.1} parent=1 // pred_region
      %925 = dma.done [#allocation7], 16
    $region37: #{tpu_custom_call.1} parent=1 // pred_fallthru
      _
    %926 = vsyncpa [#allocation7], 1

</llo_original>
